<compile_context>
chip_gen: v5e
topology: v5e:2x2
jax: 0.10.0
libtpu: 0.0.40
codegen_flags: <defaults>
</compile_context>

<pallas_src>
import jax
import jax.numpy as jnp
from jax.experimental import pallas as pl
from jax.experimental.pallas import tpu as pltpu


_LANE_CANDIDATES = (1024, 512, 256, 128)
_BLOCK_BYTES_BUDGET = 8 * 1024 * 1024    # per-block VMEM budget
_VMEM_LIMIT_BYTES = 48 * 1024 * 1024     # 4 double-buffers x 8 MiB = 32 MiB + headroom
_MIN_SPLIT_BYTES = 4 * 1024 * 1024       # force >=2 blocks above this (v7x dual TC)


def _copy_kernel(x_ref, o_ref):
    # Whole-tile vector copy.  HBM-bandwidth bound on every TPU generation
    # (per-cycle VMEM store bandwidth far exceeds 0.8-3.2 TB/s HBM), so this
    # minimal body is already at the roofline.
    o_ref[...] = x_ref[...]


def _sublane_multiple(dtype) -> int:
    # Native sublane packing: 32-bit -> 8, 16-bit -> 16, 8-bit -> 32.
    itemsize = jnp.dtype(dtype).itemsize
    return max(8, 32 // max(1, itemsize))


def _choose_layout(total, itemsize, sub):
    """Return (lane, rows, row_tile, padded_total); avoid padding when possible."""
    # Lane-dense last dim: largest candidate that divides `total` exactly.
    lane = None
    for cand in _LANE_CANDIDATES:
        if total % cand == 0:
            lane = cand
            break

    if lane is None:
        # Ragged element count: fall back to padding (pad/slice fuse under jit).
        lane = 1024 if total >= 1024 else 128
        rows = pl.cdiv(total, lane)
        ragged = True
    else:
        rows = total // lane
        ragged = False

    max_tr = max(sub, (_BLOCK_BYTES_BUDGET // (lane * itemsize)) // sub * sub)

    if not ragged:
        if rows <= max_tr:
            # Whole slab fits one block.  For multi-MiB inputs force two
            # balanced blocks so the "parallel" grid axis can shard across
            # v7x's two TensorCores.
            if rows * lane * itemsize >= _MIN_SPLIT_BYTES and rows % (2 * sub) == 0:
                return lane, rows, rows // 2, rows * lane
            return lane, rows, rows, rows * lane
        # Largest sublane-aligned divisor of rows within the budget -> no padding.
        for tr in range(max_tr, sub - 1, -sub):
            if rows % tr == 0:
                return lane, rows, tr, rows * lane
        # No aligned divisor found: pad rows up to a multiple of max_tr.
        rows_p = pl.cdiv(rows, max_tr) * max_tr
        return lane, rows_p, max_tr, rows_p * lane

    # Ragged path (lane padding already required).
    if rows <= max_tr:
        return lane, rows, rows, rows * lane
    tr = max_tr
    rows_p = pl.cdiv(rows, tr) * tr
    return lane, rows_p, tr, rows_p * lane


@jax.jit
def encoder_forward(x):
    """Pallas 'forward' for the abstract Encoder: identity on X (bit-exact)."""
    orig_shape = x.shape
    dtype = x.dtype
    itemsize = jnp.dtype(dtype).itemsize
    total = x.size
    sub = _sublane_multiple(dtype)

    lane, rows, tr, padded_total = _choose_layout(total, itemsize, sub)

    flat = x.reshape(-1)
    if padded_total != total:
        flat = jnp.pad(flat, (0, padded_total - total))
    x2d = flat.reshape(rows, lane)

    grid = (rows // tr,)

    y2d = pl.pallas_call(
        _copy_kernel,
        out_shape=jax.ShapeDtypeStruct((rows, lane), dtype),
        grid_spec=pltpu.PrefetchScalarGridSpec(
            num_scalar_prefetch=0,
            grid=grid,
            in_specs=[pl.BlockSpec((tr, lane), lambda i: (i, 0))],
            out_specs=pl.BlockSpec((tr, lane), lambda i: (i, 0)),
        ),
        compiler_params=pltpu.CompilerParams(
            dimension_semantics=("parallel",),
            vmem_limit_bytes=_VMEM_LIMIT_BYTES,
        ),
        cost_estimate=pl.CostEstimate(
            flops=0,
            transcendentals=0,
            bytes_accessed=2 * total * itemsize,
        ),
    )(x2d)

    y_flat = y2d.reshape(-1)
    if padded_total != total:
        y_flat = y_flat[:total]
    return y_flat.reshape(orig_shape)


if __name__ == "__main__":
    key = jax.random.PRNGKey(0)
    # Small NCHW input consistent with the module's (arbitrary) X.
    x = jax.random.normal(key, (2, 4, 16, 16), dtype=jnp.float32)

    y = encoder_forward(x)
    y = jax.block_until_ready(y)

    assert y.shape == x.shape and y.dtype == x.dtype
    assert bool(jnp.array_equal(y, x))
    print("KERNEL_OK")
</pallas_src>

<mosaic_0001>
module attributes {stable_mosaic.version = 11 : i64} {
  func.func @_copy_kernel(%arg0: i32, %arg1: memref<2x1024xf32, #tpu.memory_space<vmem>>, %arg2: memref<2x1024xf32, #tpu.memory_space<vmem>>) attributes {dimension_semantics = [#tpu.dimension_semantics<parallel>], iteration_bounds = array<i64: 1>, scalar_prefetch = 0 : i64, scratch_operands = 0 : i64, tpu.core_type = #tpu.core_type<tc>, window_params = [{transform_indices = @transform_0, window_bounds = array<i64: 2, 1024>}, {transform_indices = @transform_1, window_bounds = array<i64: 2, 1024>}]} {
    %c0 = arith.constant 0 : index
    %c0_0 = arith.constant 0 : index
    %0 = vector.load %arg1[%c0, %c0_0] : memref<2x1024xf32, #tpu.memory_space<vmem>>, vector<2x1024xf32>
    %c0_1 = arith.constant 0 : index
    %c0_2 = arith.constant 0 : index
    %1 = vector.load %arg2[%c0_1, %c0_2] : memref<2x1024xf32, #tpu.memory_space<vmem>>, vector<2x1024xf32>
    tpu.vector_store %arg2[%c0_1, %c0_2], %0 {strides = array<i32>} : memref<2x1024xf32, #tpu.memory_space<vmem>>, vector<2x1024xf32>,
    return
  }
  func.func @transform_0(%arg0: i32) -> (i32, i32) {
    %c0_i32 = arith.constant 0 : i32
    %c0_i32_0 = arith.constant 0 : i32
    return %arg0, %c0_i32 : i32, i32
  }
  func.func @transform_1(%arg0: i32) -> (i32, i32) {
    %c0_i32 = arith.constant 0 : i32
    %c0_i32_0 = arith.constant 0 : i32
    return %arg0, %c0_i32 : i32, i32
  }
}

</mosaic_0001>

<llo_original>
// kernel: encoder_forward.1
$region0: #{encoder_forward.1}
  #allocation0 [shape = 'u32[]', space=smem, size = 0x4, offset = 0x4, fixed_abs, tag = 'smem constant byte address 0x4 - core index']
  #allocation1 [shape = 'u32[72,128]{1,0:T(1,128)}', space=vmem, size = 0x9000, scoped, tag = 'internal scratch']
  %s0 = inlined_call_operand.vmem [shape: f32[2,1024], index: 0, kind: input, shape index: {}]
  %s1 = inlined_call_operand.vmem [shape: f32[2,1024], index: 1, kind: output, shape index: {}]
  %s2 = sld [smem:[#allocation0]]
  $region14: #{encoder_forward.1} parent=0
    _
  %s4 = ssub.s32 1, %s2
  %s5 = scalar_select 0, %s4, %s2
  // Predicated region
  $region2: #{encoder_forward.1} parent=0 // pred_check
    _
  $region3: #{encoder_forward.1} parent=0 // pred_check_branch
    %7 = sbr.rel (0) target = $region5
  $region4: #{encoder_forward.1} parent=0 // pred_region
    _
  $region5: #{encoder_forward.1} parent=0 // pred_fallthru
    _
  %v8 = vld [vmem:[%s0] sm:$0xff]
  %v9 = vld [vmem:[%s0 + $0x8] sm:$0xff]
  %10 = vst [vmem:[%s1] sm:$0xff] %v8
  %11 = vst [vmem:[%s1 + $0x8] sm:$0xff] %v9
  // Predicated region
  $region6: #{encoder_forward.1} parent=0 // pred_check
    _
  $region7: #{encoder_forward.1} parent=0 // pred_check_branch
    %13 = sbr.rel (0) target = $region9
  $region8: #{encoder_forward.1} parent=0 // pred_region
    _
  $region9: #{encoder_forward.1} parent=0 // pred_fallthru
    _
  // Predicated region
  $region10: #{encoder_forward.1} parent=0 // pred_check
    _
  $region11: #{encoder_forward.1} parent=0 // pred_check_branch
    %15 = sbr.rel (0) target = $region13
  $region12: #{encoder_forward.1} parent=0 // pred_region
    _
  $region13: #{encoder_forward.1} parent=0 // pred_fallthru
    _

</llo_original>
